<compile_context>
chip_gen: v6e
topology: v6e:2x2x1
jax: 0.10.0
libtpu: 0.0.40
codegen_flags: <defaults>
</compile_context>

<pallas_src>
import functools

import jax
import jax.numpy as jnp
import numpy as np
from jax.experimental import pallas as pl
from jax.experimental.pallas import tpu as pltpu


def _rel_pos_kernel(w_ref, b_ref, o_ref):
    """One (TM, S) row-block of one segment: o = exp(b - (j - i)^2 * w)."""
    tm, s = o_ref.shape
    # Global row offset of this block (grid axis 1 tiles rows).
    row_off = pl.program_id(1) * tm
    # Squared relative position computed on-chip (VPU).  int32 keeps the
    # square exact (matches the torch `long` buffer) for any realistic S.
    col = jax.lax.broadcasted_iota(jnp.int32, (tm, s), 1)            # j
    row = jax.lax.broadcasted_iota(jnp.int32, (tm, s), 0) + row_off  # i
    diff = col - row
    rel = (diff * diff).astype(jnp.float32)
    # exp(b - rel*w); b is (TM, 1) and broadcasts across the lane axis.
    # VALU (mul/sub) and EUP (exp) co-issue in the same bundles.
    o_ref[...] = jnp.exp(b_ref[...] - rel * w_ref[...]).astype(o_ref.dtype)


@functools.partial(jax.jit, static_argnames=("out_dtype",))
def relative_position(w: jax.Array, b: jax.Array, out_dtype=jnp.float32) -> jax.Array:
    """Pallas forward of RelativePosition.

    w: (S, S) or (B, S, S) float32
    b: (S, 1) or (B, S, 1) float32
    returns exp(-(j-i)^2 * w + b), shape (S, S) or (B, S, S), dtype `out_dtype`.
    (out_dtype=jnp.bfloat16 is allowed to halve store traffic; default stays
    f32 to match the PyTorch module.)
    """
    squeeze = w.ndim == 2
    if squeeze:
        w = w[None]
        b = b[None]
    B, S, S2 = w.shape
    assert S == S2 and b.shape == (B, S, 1), (w.shape, b.shape)
    w = w.astype(jnp.float32)
    b = b.astype(jnp.float32)

    # Row tile: whole segment if a (S, S) f32 block is small (<= 2 MiB);
    # otherwise a multiple-of-8 row tile capped so each (tm, S) block stays
    # ~<= 2 MiB (double-buffered in + out blocks fit scoped VMEM easily).
    if S * S * 4 <= 2 * 1024 * 1024:
        tm = S
    else:
        tm = max(8, min(512, (2 * 1024 * 1024 // (S * 4)) // 8 * 8))
    grid = (B, pl.cdiv(S, tm))

    n_elem = B * S * S
    cost = pl.CostEstimate(
        flops=3 * n_elem,                      # mul + sub (+ iota math)
        transcendentals=n_elem,                # exp per element
        bytes_accessed=4 * (n_elem             # w in
                            + B * S            # b in
                            + n_elem),         # out
    )

    out = pl.pallas_call(
        _rel_pos_kernel,
        out_shape=jax.ShapeDtypeStruct((B, S, S), out_dtype),
        grid_spec=pltpu.PrefetchScalarGridSpec(
            num_scalar_prefetch=0,
            grid=grid,
            in_specs=[
                pl.BlockSpec((None, tm, S), lambda bi, ri: (bi, ri, 0)),
                pl.BlockSpec((None, tm, 1), lambda bi, ri: (bi, ri, 0)),
            ],
            out_specs=pl.BlockSpec((None, tm, S), lambda bi, ri: (bi, ri, 0)),
        ),
        compiler_params=pltpu.CompilerParams(
            # Independent blocks along both axes -> megacore-shardable on v7x.
            dimension_semantics=("parallel", "parallel"),
        ),
        cost_estimate=cost,
    )(w, b)

    if squeeze:
        out = out[0]
    return out
    # TODO(synk): at seg_sz=20 the real optimization is fusing this bias into
    # the consuming attention kernel so the (S, S) matrix never touches HBM.


def init_params(seg_sz: int, key: jax.Array):
    """Deterministic parameter init mirroring the PyTorch module __init__."""
    # w = 0.5 * ones(seg_sz, seg_sz)
    w = 0.5 * jnp.ones((seg_sz, seg_sz), dtype=jnp.float32)
    # b: randn(seg_sz, 1) then xavier_uniform_(b):
    #   fan_in = 1, fan_out = seg_sz, bound = sqrt(6 / (fan_in + fan_out))
    bound = float(np.sqrt(6.0 / (1 + seg_sz)))
    b = jax.random.uniform(key, (seg_sz, 1), dtype=jnp.float32,
                           minval=-bound, maxval=bound)
    return w, b


if __name__ == "__main__":
    seg_sz = 20      # module default
    scale = 1.0      # unused in forward (kept for parity with the module signature)
    key = jax.random.PRNGKey(0)

    # Pure-JAX reference.
    idx = jnp.arange(seg_sz, dtype=jnp.float32)
    rel = (idx[None, :] - idx[:, None]) ** 2

    # --- single-segment path (matches the PyTorch module forward exactly) ---
    w, b = init_params(seg_sz, key)
    out = jax.block_until_ready(relative_position(w, b))
    ref = jnp.exp(-rel * w + b)
    np.testing.assert_allclose(np.asarray(out), np.asarray(ref), rtol=1e-6, atol=1e-6)

    # --- batched path: B segments in ONE pallas_call (amortized dispatch) ---
    B = 4
    kb_w, kb_b = jax.random.split(jax.random.PRNGKey(1))
    wb = jax.random.uniform(kb_w, (B, seg_sz, seg_sz), jnp.float32, 0.1, 1.0)
    bb = jax.random.uniform(kb_b, (B, seg_sz, 1), jnp.float32, -0.5, 0.5)
    out_b = jax.block_until_ready(relative_position(wb, bb))
    ref_b = jnp.exp(-rel[None] * wb + bb)
    np.testing.assert_allclose(np.asarray(out_b), np.asarray(ref_b), rtol=1e-6, atol=1e-6)

    print("KERNEL_OK")
</pallas_src>

<mosaic_0001>
module attributes {stable_mosaic.version = 11 : i64} {
  func.func @_rel_pos_kernel(%arg0: i32, %arg1: i32, %arg2: memref<1x20x20xf32, #tpu.memory_space<vmem>>, %arg3: memref<1x20x1xf32, #tpu.memory_space<vmem>>, %arg4: memref<1x20x20xf32, #tpu.memory_space<vmem>>) attributes {dimension_semantics = [#tpu.dimension_semantics<parallel>, #tpu.dimension_semantics<parallel>], iteration_bounds = array<i64: 1, 1>, scalar_prefetch = 0 : i64, scratch_operands = 0 : i64, tpu.core_type = #tpu.core_type<tc>, window_params = [{transform_indices = @transform_0, window_bounds = array<i64: 1, 20, 20>}, {transform_indices = @transform_1, window_bounds = array<i64: 1, 20, 1>}, {transform_indices = @transform_2, window_bounds = array<i64: 1, 20, 20>}]} {
    %c20_i32 = arith.constant 20 : i32
    %0 = arith.muli %arg1, %c20_i32 : i32
    %1 = tpu.iota {dimensions = array<i32: 1>} : vector<20x20xi32>
    %2 = tpu.iota {dimensions = array<i32: 0>} : vector<20x20xi32>
    %3 = vector.broadcast %0 : i32 to vector<20x20xi32>
    %4 = arith.addi %2, %3 : vector<20x20xi32>
    %5 = arith.subi %1, %4 : vector<20x20xi32>
    %6 = arith.muli %5, %5 : vector<20x20xi32>
    %7 = arith.sitofp %6 : vector<20x20xi32> to vector<20x20xf32>
    %c0 = arith.constant 0 : index
    %c0_0 = arith.constant 0 : index
    %c0_1 = arith.constant 0 : index
    %8 = vector.load %arg3[%c0, %c0_0, %c0_1] : memref<1x20x1xf32, #tpu.memory_space<vmem>>, vector<1x20x1xf32>
    %9 = vector.shape_cast %8 : vector<1x20x1xf32> to vector<20x1xf32>
    %c0_2 = arith.constant 0 : index
    %c0_3 = arith.constant 0 : index
    %c0_4 = arith.constant 0 : index
    %10 = vector.load %arg2[%c0_2, %c0_3, %c0_4] : memref<1x20x20xf32, #tpu.memory_space<vmem>>, vector<1x20x20xf32>
    %11 = vector.shape_cast %10 : vector<1x20x20xf32> to vector<20x20xf32>
    %12 = arith.mulf %7, %11 : vector<20x20xf32>
    %13 = vector.broadcast %9 : vector<20x1xf32> to vector<20x20xf32>
    %14 = arith.subf %13, %12 : vector<20x20xf32>
    %15 = math.exp %14 : vector<20x20xf32>
    %c0_5 = arith.constant 0 : index
    %c0_6 = arith.constant 0 : index
    %c0_7 = arith.constant 0 : index
    %16 = vector.load %arg4[%c0_5, %c0_6, %c0_7] : memref<1x20x20xf32, #tpu.memory_space<vmem>>, vector<1x20x20xf32>
    %17 = vector.shape_cast %16 : vector<1x20x20xf32> to vector<20x20xf32>
    %18 = vector.shape_cast %15 : vector<20x20xf32> to vector<1x20x20xf32>
    tpu.vector_store %arg4[%c0_5, %c0_6, %c0_7], %18 {strides = array<i32>} : memref<1x20x20xf32, #tpu.memory_space<vmem>>, vector<1x20x20xf32>,
    return
  }
  func.func @transform_0(%arg0: i32, %arg1: i32) -> (i32, i32, i32) {
    %c0_i32 = arith.constant 0 : i32
    %c0_i32_0 = arith.constant 0 : i32
    return %arg0, %arg1, %c0_i32 : i32, i32, i32
  }
  func.func @transform_1(%arg0: i32, %arg1: i32) -> (i32, i32, i32) {
    %c0_i32 = arith.constant 0 : i32
    %c0_i32_0 = arith.constant 0 : i32
    return %arg0, %arg1, %c0_i32 : i32, i32, i32
  }
  func.func @transform_2(%arg0: i32, %arg1: i32) -> (i32, i32, i32) {
    %c0_i32 = arith.constant 0 : i32
    %c0_i32_0 = arith.constant 0 : i32
    return %arg0, %arg1, %c0_i32 : i32, i32, i32
  }
}

</mosaic_0001>

<llo_original>
// kernel: relative_position.1
$region0: #{relative_position.1}
  #allocation0 [shape = 'u32[]', space=smem, size = 0x4, offset = 0x4, fixed_abs, tag = 'smem constant byte address 0x4 - core index']
  #allocation1 [shape = 'u32[144,128]{1,0:T(1,128)}', space=vmem, size = 0x12000, scoped, tag = 'internal scratch']
  %s0 = inlined_call_operand.vmem [shape: f32[1,20,20], index: 0, kind: input, shape index: {}]
  %s1 = inlined_call_operand.vmem [shape: f32[1,20,1], index: 1, kind: input, shape index: {}]
  %s2 = inlined_call_operand.hbm [shape: f32[1,20,20], index: 2, kind: output, shape index: {}]
  %s3 = sld [smem:[#allocation0]]
  $region18: #{relative_position.1} parent=0
    _
  %s5 = ssub.s32 1, %s3
  %s6 = scalar_select 0, %s5, %s3
  $region1: #{relative_position.1} parent=0
    #allocation2 [shape = 'u8[12288]{0}', space=vmem, size = 0x3000, scoped, tag = 'output window, operand 0, single buffered']
    #allocation3 [shape = 's32[1]{0}', space=sflag, size = 0x4, scoped, tag = 'scoped memory for relative_position.1']
    %7 = vsyncpa [#allocation3], 0
    // Predicated region
    $region2: #{relative_position.1} parent=1 // pred_check
      _
    $region3: #{relative_position.1} parent=1 // pred_check_branch
      %9 = sbr.rel (0) target = $region5
    $region4: #{relative_position.1} parent=1 // pred_region
      _
    $region5: #{relative_position.1} parent=1 // pred_fallthru
      _
    // Predicated region
    $region6: #{relative_position.1} parent=1 // pred_check
      _
    $region7: #{relative_position.1} parent=1 // pred_check_branch
      %11 = sbr.rel (0) target = $region9
    $region8: #{relative_position.1} parent=1 // pred_region
      _
    $region9: #{relative_position.1} parent=1 // pred_fallthru
      _
    %s12 = smul.u32 0, 20
    %v13 = vlaneseq
    %v14 = vand.u32 %v13, 127
    %v15 = vlaneseq
    %v16 = vshrl.u32 %v15, 7
    %v17 = vadd.s32 %v16, 8
    %v18 = vadd.s32 %v16, 16
    %v19 = vstv %s12
    %v20 = vadd.s32 %v16, %v19
    %v21 = vadd.s32 %v17, %v19
    %v22 = vadd.s32 %v18, %v19
    %v23 = vsub.s32 %v14, %v20
    %v24 = vsub.s32 %v14, %v21
    %v25 = vsub.s32 %v14, %v22
    %v26 = vmul.u32 %v23, %v23
    %v27 = vmul.u32 %v24, %v24
    %v28 = vmul.u32 %v25, %v25
    %v29 = vcvt.s32.f32 %v26
    %v30 = vcvt.s32.f32 %v27
    %v31 = vcvt.s32.f32 %v28
    %v32 = vld [vmem:[%s1] sm:$0xff]
    %v33 = vld [vmem:[%s1 + $0x8] sm:$0xff]
    %v34 = vld [vmem:[%s1 + $0x10] sm:$0xf]
    %v35 = vld [vmem:[%s0] sm:$0xff]
    %v36 = vld [vmem:[%s0 + $0x8] sm:$0xff]
    %v37 = vld [vmem:[%s0 + $0x10] sm:$0xf]
    %v38 = vmul.f32 %v29, %v35
    %v39 = vmul.f32 %v30, %v36
    %v40 = vmul.f32 %v31, %v37
    %42 = vset.pattern.permute.xlu0 0
    %43 = vperm.xlu0 %42, %v32
    %v44 = vpop.permute.xlu0 %43
    %47 = vset.pattern.permute.xlu0 0
    %48 = vperm.xlu0 %47, %v33
    %v49 = vpop.permute.xlu0 %48
    %52 = vset.pattern.permute.xlu0 0
    %53 = vperm.xlu0 %52, %v34
    %v54 = vpop.permute.xlu0 %53
    %v56 = vsub.f32 %v44, %v38
    %v57 = vsub.f32 %v49, %v39
    %v58 = vsub.f32 %v54, %v40
    %v59 = vmul.f32 %v56, 1.442695
    %v60 = vpow.pop %v59
    %v61 = vmul.f32 %v57, 1.442695
    %v62 = vpow.pop %v61
    %v63 = vmul.f32 %v58, 1.442695
    %v64 = vpow.pop %v63
    %vm65 = vcmask 162816
    %66 = vst.msk [vmem:[#allocation2] sm:$0xff] %vm65, %v60
    %67 = vst.msk [vmem:[#allocation2 + $0x8] sm:$0xff] %vm65, %v62
    %vm68 = vcmask 158720
    %69 = vst.msk [vmem:[#allocation2 + $0x10] sm:$0xf] %vm68, %v64
    // Predicated region
    $region10: #{relative_position.1} parent=1 // pred_check
      _
    $region11: #{relative_position.1} parent=1 // pred_check_branch
      %71 = sbr.rel (0) target = $region13
    $region12: #{relative_position.1} parent=1 // pred_region
      %s73 = ssub.s32 384, 384
      %74 = vsyncadd [#allocation3], %s73
      %s75 = sshll.u32 [#allocation2], 4
      %s76 = int_to_ptr.vmem [resolvable:$true] %s75
      %81 = dma.vmem_to_hbm [thread:$0]  %s76, 384, %s2, [#allocation3], 128, 128, 8
    $region13: #{relative_position.1} parent=1 // pred_fallthru
      _
    // Predicated region
    $region14: #{relative_position.1} parent=1 // pred_check
      _
    $region15: #{relative_position.1} parent=1 // pred_check_branch
      %83 = sbr.rel (0) target = $region17
    $region16: #{relative_position.1} parent=1 // pred_region
      %84 = dma.done [#allocation3], 384
    $region17: #{relative_position.1} parent=1 // pred_fallthru
      _
    %85 = vsyncpa [#allocation3], 1

</llo_original>
